<compile_context>
chip_gen: v5e
topology: v5e:2x2
jax: 0.10.0
libtpu: 0.0.40
codegen_flags: <defaults>
</compile_context>

<pallas_src>
import functools

import jax
import jax.numpy as jnp
from jax import lax
from jax.experimental import pallas as pl
from jax.experimental.pallas import tpu as pltpu


def _bce(x, y):
    # PyTorch nn.BCELoss (reduction='none'): each log term clamped at -100.
    log_x = jnp.maximum(jnp.log(x), -100.0)
    log_1mx = jnp.maximum(jnp.log1p(-x), -100.0)   # log1p: accurate near x=1
    return -(y * log_x + (1.0 - y) * log_1mx)


def _round_up(x, m):
    return ((x + m - 1) // m) * m


def _device_kind():
    try:
        return jax.devices()[0].device_kind.lower()
    except Exception:
        return ""


def _per_buffer_budget_bytes(kind):
    # Double-buffered map-tile budget, generation-gated:
    #   v5e : 16 MiB scoped-VMEM default      -> 4 MiB / buffer
    #   v7x : 3.2 TB/s HBM, 32 MiB scoped     -> 8 MiB / buffer
    #   else (v6e, unknown)                   -> 6 MiB / buffer (safe everywhere)
    if "v5 lite" in kind or "v5lite" in kind or "v5e" in kind:
        return 4 * 1024 * 1024
    if "v7" in kind:
        return 8 * 1024 * 1024
    return 6 * 1024 * 1024


def _num_parallel_cores(kind):
    # v7x has 2 TensorCores per chip; shard the memory-bound reduction across
    # them.  1 elsewhere (v5e/v6e have a single TC).
    return 2 if "v7" in kind else 1


def _choose_pack(f_elems, itemsize):
    # Pack S sub-rows per sample so packed rows fill a vreg's sublanes
    # (8 for f32, 16 for bf16, 32 for int8).  S must divide F so the
    # (B, F) -> (B*S, F//S) reshape is a free row-major view; fall back by
    # halving if it does not.
    s = max(1, 32 // max(1, itemsize))
    while s > 1 and f_elems % s != 0:
        s //= 2
    return s


def _choose_tile_f(fs, rows, itemsize, budget):
    # Largest lane-multiple tile keeping one buffer under `budget`.
    # NOTE: tf is floored at 128, so for pathologically large `rows`
    # (rows * 128 * itemsize > budget) the budget is not enforced.
    max_tf = budget // max(1, rows * itemsize)
    max_tf = max(128, (max_tf // 128) * 128)
    return min(max_tf, _round_up(fs, 128))


# ---------------------------------------------------------------------------
# Pallas kernel: streaming per-row sum of the packed map.
#   grid = (num_cores, tiles_per_core); leading axis "parallel", trailing
#   "arbitrary".  Each core accumulates its tile range into a (rows, 1) f32
#   VMEM accumulator and writes one partial-sum block at its last tile.
# ---------------------------------------------------------------------------
def _map_rowsum_kernel(map_ref, out_ref, acc_ref, *,
                       tiles_per_core, tf, fs, needs_mask):
    c = pl.program_id(0)
    k = pl.program_id(1)

    @pl.when(k == 0)
    def _():
        acc_ref[...] = jnp.zeros_like(acc_ref)

    # Native-dtype tile straight from HBM; cast to f32 on the VPU.
    m = map_ref[...].astype(jnp.float32)                    # (rows, tf)
    if needs_mask:
        # Mask lanes past the true row length: covers the ragged last tile
        # and fully-virtual tiles on a padded per-core range.  Pallas does
        # not zero-fill out-of-bounds lanes of a partial edge block.
        t = c * tiles_per_core + k
        col = t * tf + lax.broadcasted_iota(jnp.int32, m.shape, 1)
        m = jnp.where(col < fs, m, 0.0)
    acc_ref[...] += jnp.sum(m, axis=1, keepdims=True)       # (rows, 1)

    @pl.when(k == tiles_per_core - 1)
    def _():
        out_ref[0] = acc_ref[...]


def _whole_map_row_sums(m2, *, tile_f=None, num_cores=None):
    """Per-sample sums of a (B, F) probability map via the Pallas kernel."""
    B, F = m2.shape
    kind = _device_kind()
    if num_cores is None:
        num_cores = _num_parallel_cores(kind)

    itemsize = m2.dtype.itemsize
    S = _choose_pack(F, itemsize)
    fs = F // S
    rows = B * S
    m_packed = m2.reshape(rows, fs)        # free row-major reshape (no copy)

    if tile_f is None:
        tf = _choose_tile_f(fs, rows, itemsize, _per_buffer_budget_bytes(kind))
    else:
        tf = min(max(128, _round_up(int(tile_f), 128)), _round_up(fs, 128))

    num_tiles = -(-fs // tf)                       # cdiv
    tiles_per_core = -(-num_tiles // num_cores)    # cdiv
    virtual_tiles = tiles_per_core * num_cores
    needs_mask = (fs % tf != 0) or (virtual_tiles != num_tiles)

    if virtual_tiles == num_tiles:
        map_index = lambda c, k: (0, c * tiles_per_core + k)
    else:
        # Clamp fully-virtual tiles onto the last real block; the in-kernel
        # mask zeroes their contribution.
        map_index = lambda c, k: (0, jnp.minimum(c * tiles_per_core + k,
                                                 num_tiles - 1))

    kernel = functools.partial(
        _map_rowsum_kernel,
        tiles_per_core=tiles_per_core, tf=tf, fs=fs, needs_mask=needs_mask)

    # TODO(synk): optionally set pipeline_mode=pl.Buffered(3) on the map
    # BlockSpec for v7x to further hide per-step overhead at 3.2 TB/s.
    partial_sums = pl.pallas_call(
        kernel,
        out_shape=jax.ShapeDtypeStruct((num_cores, rows, 1), jnp.float32),
        grid=(num_cores, tiles_per_core),
        in_specs=[pl.BlockSpec((rows, tf), map_index)],
        out_specs=pl.BlockSpec((1, rows, 1), lambda c, k: (c, 0, 0)),
        scratch_shapes=[pltpu.VMEM((rows, 1), jnp.float32)],
        compiler_params=pltpu.CompilerParams(
            dimension_semantics=("parallel", "arbitrary")),
    )(m_packed)

    # Fold partials: over cores and over the S packed sub-rows per sample.
    return partial_sums.reshape(num_cores, B, S).sum(axis=(0, 2))


def map_label_loss(pred, out_map, label, label_loss_on_whole_map=False,
                   tile_f=None, num_cores=None):
    """Pallas implementation of MapLabelLoss.forward. Returns {'loss': scalar}."""
    B = label.shape[0]
    p = pred.reshape(B).astype(jnp.float32)
    y = label.reshape(B).astype(jnp.float32)

    if not label_loss_on_whole_map:
        # B-element op: plain jnp — a pallas_call launch would dominate the
        # compute and block XLA from fusing it with surrounding ops.
        return {"loss": _bce(p, y).mean()}

    # --- whole-map mode: Pallas streaming reduction + tiny jnp epilogue ----
    m2 = out_map.reshape(B, -1)
    F = m2.shape[1]
    row_sums = _whole_map_row_sums(m2, tile_f=tile_f, num_cores=num_cores)
    map_mean = row_sums * (1.0 / float(F))         # true-F divisor
    # PyTorch: if label[i] == 0 -> BCE(out_map[i].mean(), y_i) else BCE(p_i, y_i)
    per_sample = jnp.where(y == 0.0, _bce(map_mean, y), _bce(p, y))
    return {"loss": per_sample.sum() * (1.0 / float(B))}


# ---------------------------------------------------------------------------
# pure-JAX reference for self-check
# ---------------------------------------------------------------------------
def _reference(pred, out_map, label, whole_map):
    p = pred.astype(jnp.float32)
    y = label.astype(jnp.float32)
    if whole_map:
        m = out_map.reshape(label.shape[0], -1).astype(jnp.float32)
        map_mean = m.mean(axis=1)
        per = jnp.where(y == 0.0, _bce(map_mean, y), _bce(p, y))
        return per.sum() / label.shape[0]
    return _bce(p, y).mean()


def _check(name, got, want, rtol=2e-4, atol=1e-6):
    got = float(got)
    want = float(want)
    assert abs(got - want) <= atol + rtol * abs(want), (name, got, want)


if __name__ == "__main__":
    key = jax.random.PRNGKey(0)
    k1, k2, k3 = jax.random.split(key, 3)

    B = 2
    # pred / out_map are probabilities (post-sigmoid), as nn.BCELoss expects.
    pred = jax.random.uniform(k1, (B,), jnp.float32, 0.05, 0.95)
    label = jnp.array([0.0, 1.0], jnp.float32)
    out_map_main = jax.random.uniform(k2, (B, 4, 32, 32), jnp.float32, 0.05, 0.95)

    # 1) default mode (mean BCE on pred/label) — plain jnp path.
    out_default = map_label_loss(pred, out_map_main, label,
                                 label_loss_on_whole_map=False)
    jax.block_until_ready(out_default["loss"])
    _check("default", out_default["loss"],
           _reference(pred, out_map_main, label, False))

    # 2) whole-map mode, multi-tile pipelined path.
    #    F = 4*32*32 = 4096 (f32) -> S=8, Fs=512, tf=128 -> 4 tiles.
    out_whole = map_label_loss(pred, out_map_main, label,
                               label_loss_on_whole_map=True, tile_f=128)
    jax.block_until_ready(out_whole["loss"])
    _check("whole_map", out_whole["loss"],
           _reference(pred, out_map_main, label, True))

    # 3) whole-map, ragged F, native-bf16 map (in-kernel mask + native DMA).
    #    F = 5*18*18 = 1620 -> S=4, Fs=405, tf=128 -> 4 tiles, last partial.
    out_map_bf16 = jax.random.uniform(k3, (B, 5, 18, 18), jnp.float32,
                                      0.05, 0.95).astype(jnp.bfloat16)
    out_ragged = map_label_loss(pred, out_map_bf16, label,
                                label_loss_on_whole_map=True, tile_f=128)
    jax.block_until_ready(out_ragged["loss"])
    _check("whole_map_bf16_ragged", out_ragged["loss"],
           _reference(pred, out_map_bf16, label, True))

    # 4) whole-map with the v7x-style 2-core split exercised explicitly
    #    (runs serially on 1-TC chips; core 1 gets a clamped + fully-masked
    #    virtual tile since the tile count (1) is not divisible by 2).
    out_2core = map_label_loss(pred, out_map_main, label,
                               label_loss_on_whole_map=True, tile_f=512,
                               num_cores=2)
    jax.block_until_ready(out_2core["loss"])
    _check("whole_map_2core", out_2core["loss"],
           _reference(pred, out_map_main, label, True))

    # 5) whole-map, fully automatic (generation-aware budget / core count).
    out_auto = map_label_loss(pred, out_map_main, label,
                              label_loss_on_whole_map=True)
    jax.block_until_ready(out_auto["loss"])
    _check("whole_map_auto", out_auto["loss"],
           _reference(pred, out_map_main, label, True))

    print("KERNEL_OK")
</pallas_src>

<mosaic_0001>
module attributes {stable_mosaic.version = 11 : i64} {
  func.func @_map_rowsum_kernel(%arg0: i32, %arg1: i32, %arg2: memref<16x128xf32, #tpu.memory_space<vmem>>, %arg3: memref<1x16x1xf32, #tpu.memory_space<vmem>>, %arg4: memref<16x1xf32, #tpu.memory_space<vmem>>) attributes {dimension_semantics = [#tpu.dimension_semantics<parallel>, #tpu.dimension_semantics<arbitrary>], iteration_bounds = array<i64: 1, 4>, scalar_prefetch = 0 : i64, scratch_operands = 1 : i64, tpu.core_type = #tpu.core_type<tc>, window_params = [{transform_indices = @transform_0, window_bounds = array<i64: 16, 128>}, {transform_indices = @transform_1, window_bounds = array<i64: 1, 16, 1>}]} {
    %c0_i32 = arith.constant 0 : i32
    %0 = arith.cmpi eq, %arg1, %c0_i32 : i32
    %1 = arith.extui %0 : i1 to i32
    %c0_i32_0 = arith.constant 0 : i32
    %2 = arith.cmpi ne, %1, %c0_i32_0 : i32
    scf.if %2 {
      %cst_7 = arith.constant 0.000000e+00 : f32
      %12 = vector.broadcast %cst_7 : f32 to vector<16x1xf32>
      %c0_8 = arith.constant 0 : index
      %c0_9 = arith.constant 0 : index
      %13 = vector.load %arg4[%c0_8, %c0_9] : memref<16x1xf32, #tpu.memory_space<vmem>>, vector<16x1xf32>
      tpu.vector_store %arg4[%c0_8, %c0_9], %12 {strides = array<i32>} : memref<16x1xf32, #tpu.memory_space<vmem>>, vector<16x1xf32>,
    } else {
    }
    %c0 = arith.constant 0 : index
    %c0_1 = arith.constant 0 : index
    %3 = vector.load %arg2[%c0, %c0_1] : memref<16x128xf32, #tpu.memory_space<vmem>>, vector<16x128xf32>
    %c0_2 = arith.constant 0 : index
    %c0_3 = arith.constant 0 : index
    %4 = vector.load %arg4[%c0_2, %c0_3] : memref<16x1xf32, #tpu.memory_space<vmem>>, vector<16x1xf32>
    %cst = arith.constant dense<0.000000e+00> : vector<16xf32>
    %5 = vector.multi_reduction <add>, %3, %cst [1] : vector<16x128xf32> to vector<16xf32>
    %6 = vector.shape_cast %5 : vector<16xf32> to vector<16x1xf32>
    %7 = arith.addf %4, %6 : vector<16x1xf32>
    %c0_4 = arith.constant 0 : index
    %c0_5 = arith.constant 0 : index
    %8 = vector.load %arg4[%c0_4, %c0_5] : memref<16x1xf32, #tpu.memory_space<vmem>>, vector<16x1xf32>
    tpu.vector_store %arg4[%c0_4, %c0_5], %7 {strides = array<i32>} : memref<16x1xf32, #tpu.memory_space<vmem>>, vector<16x1xf32>,
    %c3_i32 = arith.constant 3 : i32
    %9 = arith.cmpi eq, %arg1, %c3_i32 : i32
    %10 = arith.extui %9 : i1 to i32
    %c0_i32_6 = arith.constant 0 : i32
    %11 = arith.cmpi ne, %10, %c0_i32_6 : i32
    scf.if %11 {
      %c0_7 = arith.constant 0 : index
      %c0_8 = arith.constant 0 : index
      %12 = vector.load %arg4[%c0_7, %c0_8] : memref<16x1xf32, #tpu.memory_space<vmem>>, vector<16x1xf32>
      %c0_9 = arith.constant 0 : index
      %c0_10 = arith.constant 0 : index
      %c0_11 = arith.constant 0 : index
      %13 = vector.load %arg3[%c0_9, %c0_10, %c0_11] : memref<1x16x1xf32, #tpu.memory_space<vmem>>, vector<1x16x1xf32>
      %14 = vector.shape_cast %13 : vector<1x16x1xf32> to vector<16x1xf32>
      %15 = vector.shape_cast %12 : vector<16x1xf32> to vector<1x16x1xf32>
      tpu.vector_store %arg3[%c0_9, %c0_10, %c0_11], %15 {strides = array<i32>} : memref<1x16x1xf32, #tpu.memory_space<vmem>>, vector<1x16x1xf32>,
    } else {
    }
    return
  }
  func.func @transform_0(%arg0: i32, %arg1: i32) -> (i32, i32) {
    %c4_i32 = arith.constant 4 : i32
    %0 = arith.muli %arg0, %c4_i32 : i32
    %1 = arith.addi %0, %arg1 : i32
    %c0_i32 = arith.constant 0 : i32
    %c0_i32_0 = arith.constant 0 : i32
    return %c0_i32, %1 : i32, i32
  }
  func.func @transform_1(%arg0: i32, %arg1: i32) -> (i32, i32, i32) {
    %c0_i32 = arith.constant 0 : i32
    %c0_i32_0 = arith.constant 0 : i32
    %c0_i32_1 = arith.constant 0 : i32
    return %arg0, %c0_i32, %c0_i32_0 : i32, i32, i32
  }
}

</mosaic_0001>

<llo_original>
// kernel: tpu_custom_call.1
$region0: #{tpu_custom_call.1}
  #allocation0 [shape = 'u32[]', space=smem, size = 0x4, offset = 0x4, fixed_abs, tag = 'smem constant byte address 0x4 - core index']
  #allocation1 [shape = 'u32[72,128]{1,0:T(1,128)}', space=vmem, size = 0x9000, scoped, tag = 'internal scratch']
  #allocation2 [shape = 'f32[16,1]{1,0:T(8,128)}', space=vmem, size = 0x2000, scoped, tag = 'scratch operand']
  %s0 = inlined_call_operand.hbm [shape: f32[16,512], index: 0, kind: input, shape index: {}]
  %s1 = inlined_call_operand.vmem [shape: f32[1,16,1], index: 1, kind: output, shape index: {}]
  %s2 = sld [smem:[#allocation0]]
  $region49: #{tpu_custom_call.1} parent=0
    _
  %s4 = ssub.s32 1, %s2
  %s5 = scalar_select 0, %s4, %s2
  $region1: #{tpu_custom_call.1} parent=0
    #allocation3 [shape = 'u8[16384]{0}', space=vmem, size = 0x4000, scoped, tag = 'input window, operand 0']
    #allocation4 [shape = 's32[2]{0}', space=sflag, size = 0x8, scoped, tag = 'scoped memory for tpu_custom_call.1']
    %6 = vsyncpa [#allocation4], 0
    %s7 = scalar_lea.sflag [#allocation4], 1
    %8 = vsyncpa %s7, 0
    loop: start=0, step=1, limit=6
    $region2: #{tpu_custom_call.1} parent=1 // loop_pre_header
      _
    $region3: #{tpu_custom_call.1} parent=1 // loop_header
      %s10 = sphi 0, %s14
      %p11 = scmp.ge.s32.totalorder %s10, 6
      %s17 = sphi 0, %s29
      %s18 = sphi 0, %s25
      %s19 = sphi 0, %s17
      %s20 = sphi 0, %s18
      %s21 = sphi 0, %s19
      %s22 = sphi 0, %s20
      %s36 = sphi 0, %s38
      %s39 = sphi 0, %s36
      %s40 = sphi 0, %s39
      %s56 = sphi 0, %s40
      %s62 = sphi 0, %s64
      %s65 = sphi 0, %s62
      %s66 = sphi 0, %s65
      %s82 = sphi 0, %s66
    $region4: #{tpu_custom_call.1} parent=1 // loop_header_branch
      %13 = sbr.rel (%p11) target = $region8
    $region5: #{tpu_custom_call.1} parent=1 // loop_body
      %s15 = ssub.s32 %s10, 1
      %s16 = ssub.s32 %s10, 2
      %s23 = sadd.s32 1, %s18
      %p24 = scmp.ge.s32.totalorder %s23, 4
      %s25 = scalar_select %p24, 0, %s23
      %s26 = sadd.s32 1, %s17
      %s27 = scalar_select %p24, %s26, %s17
      %p28 = scmp.ge.s32.totalorder %s27, 1
      %s29 = scalar_select %p28, 0, %s27
      %s30 = smul.u32 %s17, 4
      %s31 = sadd.s32 %s30, %s18
      %s32 = smul.u32 %s29, 4
      %s33 = sadd.s32 %s32, %s25
      %s34 = ssub.s32 %s31, %s33
      %p35 = scmp.eq.s32.totalorder %s34, 0
      %s37 = sadd.s32 %s36, 1
      %s38 = scalar_select %p35, %s36, %s37
      %p41 = pneg %p35
      %p42 = scmp.eq.s32.totalorder %s10, 3
      %p43 = por %p41, %p42
      %p44 = scmp.ne.s32.totalorder %s36, %s39
      %p45 = scmp.eq.s32.totalorder %s10, 0
      %p46 = por %p44, %p45
      %p47 = scmp.ne.s32.totalorder %s36, %s39
      %p48 = scmp.eq.s32.totalorder %s15, 3
      %p49 = por %p47, %p48
      %p50 = scmp.ne.s32.totalorder %s39, %s40
      %p51 = scmp.eq.s32.totalorder %s15, 0
      %p52 = por %p50, %p51
      %p53 = scmp.ne.s32.totalorder %s39, %s40
      %p54 = scmp.eq.s32.totalorder %s16, 3
      %p55 = por %p53, %p54
      %p57 = scmp.ne.s32.totalorder %s40, %s56
      %p58 = scmp.eq.s32.totalorder %s16, 0
      %p59 = por %p57, %p58
      %s60 = ssub.s32 %s17, %s29
      %p61 = scmp.eq.s32.totalorder %s60, 0
      %s63 = sadd.s32 %s62, 1
      %s64 = scalar_select %p61, %s62, %s63
      %p67 = pneg %p61
      %p68 = scmp.eq.s32.totalorder %s10, 3
      %p69 = por %p67, %p68
      %p70 = scmp.ne.s32.totalorder %s62, %s65
      %p71 = scmp.eq.s32.totalorder %s10, 0
      %p72 = por %p70, %p71
      %p73 = scmp.ne.s32.totalorder %s62, %s65
      %p74 = scmp.eq.s32.totalorder %s15, 3
      %p75 = por %p73, %p74
      %p76 = scmp.ne.s32.totalorder %s65, %s66
      %p77 = scmp.eq.s32.totalorder %s15, 0
      %p78 = por %p76, %p77
      %p79 = scmp.ne.s32.totalorder %s65, %s66
      %p80 = scmp.eq.s32.totalorder %s16, 3
      %p81 = por %p79, %p80
      %p83 = scmp.ne.s32.totalorder %s66, %s82
      %p84 = scmp.eq.s32.totalorder %s16, 0
      %p85 = por %p83, %p84
      %p86 = scmp.le.s32.totalorder 1, %s10
      %p87 = scmp.lt.s32.totalorder %s10, 5
      %p88 = pnand %p86, %p87
      %p89 = pneg %p88
      // Predicated region
      $region9: #{tpu_custom_call.1} parent=5 // pred_check
        _
      $region10: #{tpu_custom_call.1} parent=5 // pred_check_branch
        %91 = sbr.rel (%p88) target = $region12
      $region11: #{tpu_custom_call.1} parent=5 // pred_region
        %s92 = ssub.s32 %s10, 1
      $region12: #{tpu_custom_call.1} parent=5 // pred_fallthru
        _
      %p93 = scmp.lt.s32.totalorder %s10, 4
      // Predicated region
      $region13: #{tpu_custom_call.1} parent=5 // pred_check
        %p94 = pneg %p93
      $region14: #{tpu_custom_call.1} parent=5 // pred_check_branch
        %96 = sbr.rel (%p94) target = $region16
      $region15: #{tpu_custom_call.1} parent=5 // pred_region
        // Predicated region
        $region17: #{tpu_custom_call.1} parent=15 // pred_check
          %p97 = pneg %p46
        $region18: #{tpu_custom_call.1} parent=15 // pred_check_branch
          %99 = sbr.rel (%p97) target = $region20
        $region19: #{tpu_custom_call.1} parent=15 // pred_region
          %s100 = sand.u32 %s36, 1
          %s101 = scalar_lea.sflag [#allocation4], %s100
          %s102 = sand.u32 %s36, 1
          %s103 = smul.addr %s102, 16
          %s104 = scalar_lea.vmem [#allocation3], %s103
          %s105 = smul.u32 %s17, 4
          %s106 = sadd.s32 %s105, %s18
          %108 = vsyncadd %s101, 0
          %s109 = smul.addr %s106, 8
          %s110 = scalar_lea.hbm %s0, %s109
          %s111 = sshll.u32 %s110, 4
          %s112 = int_to_ptr.hbm [resolvable:$true] %s111
          %s113 = sshll.u32 %s104, 4
          %s114 = int_to_ptr.vmem [resolvable:$true] %s113
          %119 = dma.hbm_to_vmem [thread:$0]  %s112, 256, %s114, %s101, 512, 128, 8
        $region20: #{tpu_custom_call.1} parent=15 // pred_fallthru
          _
      $region16: #{tpu_custom_call.1} parent=5 // pred_fallthru
        _
      %p120 = scmp.le.s32.totalorder 1, %s10
      %p121 = scmp.lt.s32.totalorder %s10, 5
      %p122 = pnand %p120, %p121
      %p123 = pneg %p122
      // Predicated region
      $region21: #{tpu_custom_call.1} parent=5 // pred_check
        _
      $region22: #{tpu_custom_call.1} parent=5 // pred_check_branch
        %125 = sbr.rel (%p122) target = $region24
      $region23: #{tpu_custom_call.1} parent=5 // pred_region
        %s126 = ssub.s32 %s10, 1
        %s127 = sand.u32 %s39, 1
        %s128 = scalar_lea.sflag [#allocation4], %s127
        %s129 = sand.u32 %s39, 1
        %s130 = smul.addr %s129, 16
        %s131 = scalar_lea.vmem [#allocation3], %s130
        // Predicated region
        $region25: #{tpu_custom_call.1} parent=23 // pred_check
          %p132 = pneg %p52
        $region26: #{tpu_custom_call.1} parent=23 // pred_check_branch
          %134 = sbr.rel (%p132) target = $region28
        $region27: #{tpu_custom_call.1} parent=23 // pred_region
          %136 = dma.done %s128, 256
        $region28: #{tpu_custom_call.1} parent=23 // pred_fallthru
          _
        %s137 = sand.u32 %s39, 1
        %s138 = scalar_lea.sflag [#allocation4], %s137
        %s139 = sand.u32 %s39, 1
        %s140 = smul.addr %s139, 16
        %s141 = scalar_lea.vmem [#allocation3], %s140
        %p142 = pneg %p52
        %p143 = pneg %p49
        %p144 = pneg %p78
        %p145 = pneg %p75
        %p146 = scmp.lt.s32.totalorder %s19, 0
        %s147 = scalar_select %p146, %s19, 0
        %s148 = smul.addr %s147, 2
        %s149 = smul.addr %s148, 8
        %s150 = scalar_lea.vmem %s1, %s149
        %s151 = smul.u32 %s19, 4
        %s152 = sadd.s32 %s151, %s20
        %p153 = scmp.lt.s32.totalorder %s19, 0
        %s154 = scalar_select %p153, %s19, 0
        %s155 = smul.addr %s154, 2
        %s156 = smul.addr %s155, 8
        %s157 = scalar_lea.vmem %s1, %s156
        %p158 = scmp.eq.s32.totalorder %s20, 0
        // Predicated region
        $region29: #{tpu_custom_call.1} parent=23 // pred_check
          %p159 = pneg %p158
        $region30: #{tpu_custom_call.1} parent=23 // pred_check_branch
          %161 = sbr.rel (%p159) target = $region32
        $region31: #{tpu_custom_call.1} parent=23 // pred_region
          %vm162 = vcmask 7168
          %163 = vst.msk [vmem:[#allocation2] sm:$0xff] %vm162, 0.0
          %164 = vst.msk [vmem:[#allocation2 + $0x8] sm:$0xff] %vm162, 0.0
        $region32: #{tpu_custom_call.1} parent=23 // pred_fallthru
          _
        %v165 = vld [vmem:[%s131] sm:$0xff]
        %v166 = vld [vmem:[%s131 + $0x8] sm:$0xff]
        %v167 = vld [vmem:[#allocation2] sm:$0xff]
        %v168 = vld [vmem:[#allocation2 + $0x8] sm:$0xff]
        %169 = vadd.xlane.f32.xlu0 %v165
        %v170 = vpop.xlane.xlu0 %169
        %171 = vadd.xlane.f32.xlu0 %v166
        %v172 = vpop.xlane.xlu0 %171
        %v173 = vadd.f32 %v167, %v170
        %v174 = vadd.f32 %v168, %v172
        %vm175 = vcmask 7168
        %176 = vst.msk [vmem:[#allocation2] sm:$0xff] %vm175, %v173
        %177 = vst.msk [vmem:[#allocation2 + $0x8] sm:$0xff] %vm175, %v174
        %p178 = scmp.eq.s32.totalorder %s20, 3
        // Predicated region
        $region33: #{tpu_custom_call.1} parent=23 // pred_check
          %p179 = pneg %p178
        $region34: #{tpu_custom_call.1} parent=23 // pred_check_branch
          %181 = sbr.rel (%p179) target = $region36
        $region35: #{tpu_custom_call.1} parent=23 // pred_region
          %v182 = vld [vmem:[#allocation2] sm:$0xff]
          %v183 = vld [vmem:[#allocation2 + $0x8] sm:$0xff]
          %184 = vst.msk [vmem:[%s157] sm:$0xff] %vm175, %v182
          %185 = vst.msk [vmem:[%s157 + $0x8] sm:$0xff] %vm175, %v183
        $region36: #{tpu_custom_call.1} parent=23 // pred_fallthru
          _
        %p186 = scmp.lt.s32.totalorder %s19, 0
        %s187 = scalar_select %p186, %s19, 0
        %s188 = smul.addr %s187, 2
        %s189 = smul.addr %s188, 8
        %s190 = scalar_lea.vmem %s1, %s189
        // Predicated region
        $region37: #{tpu_custom_call.1} parent=23 // pred_check
          %p191 = pneg %p75
        $region38: #{tpu_custom_call.1} parent=23 // pred_check_branch
          %193 = sbr.rel (%p191) target = $region40
        $region39: #{tpu_custom_call.1} parent=23 // pred_region
          _
        $region40: #{tpu_custom_call.1} parent=23 // pred_fallthru
          _
        // Predicated region
        $region41: #{tpu_custom_call.1} parent=23 // pred_check
          %p194 = pneg %p75
        $region42: #{tpu_custom_call.1} parent=23 // pred_check_branch
          %196 = sbr.rel (%p194) target = $region44
        $region43: #{tpu_custom_call.1} parent=23 // pred_region
          %p197 = scmp.lt.s32.totalorder %s19, 0
          %s198 = scalar_select %p197, %s19, 0
          %s199 = smul.addr %s198, 2
          %s200 = smul.addr %s199, 8
          %s201 = scalar_lea.vmem %s1, %s200
        $region44: #{tpu_custom_call.1} parent=23 // pred_fallthru
          _
      $region24: #{tpu_custom_call.1} parent=5 // pred_fallthru
        _
      %p202 = scmp.le.s32.totalorder 2, %s10
      // Predicated region
      $region45: #{tpu_custom_call.1} parent=5 // pred_check
        %p203 = pneg %p202
      $region46: #{tpu_custom_call.1} parent=5 // pred_check_branch
        %205 = sbr.rel (%p203) target = $region48
      $region47: #{tpu_custom_call.1} parent=5 // pred_region
        %s206 = ssub.s32 %s10, 2
      $region48: #{tpu_custom_call.1} parent=5 // pred_fallthru
        _
    $region6: #{tpu_custom_call.1} parent=1 // loop_footer
      %s14 = sadd.s32 1, %s10
    $region7: #{tpu_custom_call.1} parent=1 // loop_footer_branch
      %9 = sbr.rel target = $region3
    $region8: #{tpu_custom_call.1} parent=1 // loop_exit
      _
    %207 = vsyncpa [#allocation4], 1
    %s208 = scalar_lea.sflag [#allocation4], 1
    %209 = vsyncpa %s208, 1

</llo_original>
